<compile_context>
chip_gen: v7x
topology: tpu7x:2x2x1
jax: 0.10.0
libtpu: 0.0.40
codegen_flags: <defaults>
</compile_context>

<pallas_src>
import functools

import jax
import jax.numpy as jnp
from jax.experimental import pallas as pl
from jax.experimental.pallas import tpu as pltpu

LANE = 128
SUBLANE = 8
H1 = 128        # first hidden width (already lane-dense)
H2 = 64         # second hidden width in the PyTorch module
H2_PAD = 128    # zero-padded to a full lane width (exact: ReLU(0)=0, w3 rows 0)


def _round_up(x, m):
    return pl.cdiv(x, m) * m


def actor_kernel(x_ref, w1_ref, b1_ref, w2_ref, b2_ref, w3_ref, b3_ref, mean_ref):
    # x_ref: (TB, F) f32 ; weights bf16 ; biases f32 ; mean_ref: (TB, A) f32
    x = x_ref[...].astype(jnp.bfloat16)

    h1 = jnp.dot(x, w1_ref[...], preferred_element_type=jnp.float32) + b1_ref[...]
    h1 = jnp.maximum(h1, 0.0)

    h2 = jnp.dot(h1.astype(jnp.bfloat16), w2_ref[...],
                 preferred_element_type=jnp.float32) + b2_ref[...]
    h2 = jnp.maximum(h2, 0.0)

    mean = jnp.dot(h2.astype(jnp.bfloat16), w3_ref[...],
                   preferred_element_type=jnp.float32) + b3_ref[...]
    mean_ref[...] = mean.astype(mean_ref.dtype)


def prepare_params(params):
    """One-time weight cast/pad (call once, OUTSIDE the per-step forward).

    H2 (=64) is zero-padded to 128 so h2 is lane-dense. The padding is exact:
    padded w2 columns and w3 rows are zero, and ReLU(0) = 0.
    """
    w1, b1, w2, b2, w3, b3, log_std = params
    f32, bf16 = jnp.float32, jnp.bfloat16
    act_dim = w3.shape[1]

    w1_p = w1.astype(bf16)                                                  # (F, 128)
    b1_p = b1.reshape(1, H1).astype(f32)
    w2_p = jnp.zeros((H1, H2_PAD), bf16).at[:, :H2].set(w2.astype(bf16))
    b2_p = jnp.zeros((1, H2_PAD), f32).at[:, :H2].set(b2.reshape(1, H2).astype(f32))
    w3_p = jnp.zeros((H2_PAD, act_dim), bf16).at[:H2, :].set(w3.astype(bf16))
    b3_p = b3.reshape(1, act_dim).astype(f32)
    exp_std = jnp.exp(log_std).reshape(1, act_dim).astype(f32)              # x-indep.
    return (w1_p, b1_p, w2_p, b2_p, w3_p, b3_p, exp_std)


@functools.partial(jax.jit, static_argnames=("block_batch",))
def continuous_actor_forward(x, prep_params, *, block_batch=1024):
    """Returns (action_mean, action_std) — the Normal distribution parameters."""
    w1, b1, w2, b2, w3, b3, exp_std = prep_params
    B, F = x.shape
    act_dim = w3.shape[1]
    f32 = jnp.float32

    # Batch tiling: sublane multiple; big tiles amortize the ~0.35 us/step
    # overhead, but keep >= 2 grid steps when the batch allows it so the v7x
    # megacore ("parallel" axis) can shard the work across its 2 TensorCores.
    bb = _round_up(max(block_batch, SUBLANE), SUBLANE)
    B_sub = _round_up(B, SUBLANE)
    half = _round_up(pl.cdiv(B_sub, 2), SUBLANE)
    TB = min(bb, half)
    grid = (pl.cdiv(B, TB),)
    # NOTE: the last grid step may read past the end of x (garbage rows).
    # Rows are independent and the matching out-of-bounds output rows are
    # discarded, so this is safe — do NOT add cross-row reductions here.

    flops = 2 * B * (F * H1 + H1 * H2_PAD + H2_PAD * act_dim)
    bytes_accessed = (x.size * 4
                      + (w1.size + w2.size + w3.size) * 2
                      + (H1 + H2_PAD + act_dim) * 4
                      + B * act_dim * 4)

    mean = pl.pallas_call(
        actor_kernel,
        out_shape=jax.ShapeDtypeStruct((B, act_dim), f32),
        grid=grid,
        in_specs=[
            pl.BlockSpec((TB, F), lambda i: (i, 0)),             # x: streamed tile
            pl.BlockSpec((F, H1), lambda i: (0, 0)),             # w1: VMEM-resident
            pl.BlockSpec((1, H1), lambda i: (0, 0)),             # b1
            pl.BlockSpec((H1, H2_PAD), lambda i: (0, 0)),        # w2 (H2 -> 128)
            pl.BlockSpec((1, H2_PAD), lambda i: (0, 0)),         # b2
            pl.BlockSpec((H2_PAD, act_dim), lambda i: (0, 0)),   # w3
            pl.BlockSpec((1, act_dim), lambda i: (0, 0)),        # b3
        ],
        out_specs=pl.BlockSpec((TB, act_dim), lambda i: (i, 0)),  # narrow output
        compiler_params=pltpu.CompilerParams(
            dimension_semantics=("parallel",),
        ),
        cost_estimate=pl.CostEstimate(flops=flops, transcendentals=0,
                                      bytes_accessed=bytes_accessed),
    )(x, w1, b1, w2, b2, w3, b3)

    # std = exp(log_std).expand_as(mean) — x-independent, precomputed in prep.
    std = jnp.broadcast_to(exp_std, (B, act_dim))
    return mean, std


def init_params(key, feature_dim, action_dim, log_std_init=-0.5):
    """Deterministic synthetic params (shapes match the nn.Linear layers)."""
    k1, k2, k3 = jax.random.split(key, 3)
    # Weights stored (in, out); biases 2-D (1, out) for TPU friendliness.
    w1 = jax.random.normal(k1, (feature_dim, 128), jnp.float32) * 0.1
    b1 = jnp.zeros((1, 128), jnp.float32)
    w2 = jax.random.normal(k2, (128, 64), jnp.float32) * 0.1
    b2 = jnp.zeros((1, 64), jnp.float32)
    w3 = jax.random.normal(k3, (64, action_dim), jnp.float32) * 0.1
    b3 = jnp.zeros((1, action_dim), jnp.float32)
    log_std = jnp.full((1, action_dim), log_std_init, jnp.float32)
    return (w1, b1, w2, b2, w3, b3, log_std)


def reference_forward(x, params):
    w1, b1, w2, b2, w3, b3, log_std = params
    h1 = jnp.maximum(x @ w1 + b1, 0.0)
    h2 = jnp.maximum(h1 @ w2 + b2, 0.0)
    mean = h2 @ w3 + b3
    std = jnp.broadcast_to(jnp.exp(log_std), mean.shape)
    return mean, std


if __name__ == "__main__":
    key = jax.random.PRNGKey(0)
    k_in, k_par, k_in2 = jax.random.split(key, 3)

    feature_dim, action_dim = 8, 2
    params = init_params(k_par, feature_dim, action_dim)
    prep = prepare_params(params)          # one-time cast/pad, outside the jit

    ok = True

    # Small batch (single grid step, tiny tile).
    x_small = jax.random.normal(k_in, (8, feature_dim), jnp.float32)
    mean, std = continuous_actor_forward(x_small, prep)
    jax.block_until_ready((mean, std))
    mean_r, std_r = reference_forward(x_small, params)
    ok &= bool(jnp.allclose(mean, mean_r, atol=2e-2, rtol=2e-2))   # bf16 matmuls
    ok &= bool(jnp.allclose(std, std_r, atol=1e-6))

    # Larger, non-aligned batch: exercises the 2-step grid + partial last tile.
    x_big = jax.random.normal(k_in2, (300, feature_dim), jnp.float32)
    mean2, std2 = continuous_actor_forward(x_big, prep, block_batch=1024)
    jax.block_until_ready((mean2, std2))
    mean2_r, std2_r = reference_forward(x_big, params)
    ok &= bool(jnp.allclose(mean2, mean2_r, atol=2e-2, rtol=2e-2))
    ok &= bool(jnp.allclose(std2, std2_r, atol=1e-6))

    assert ok, "mismatch vs pure-JAX reference"
    print("KERNEL_OK")
</pallas_src>

<mosaic_0001>
module attributes {stable_mosaic.version = 11 : i64} {
  func.func @actor_kernel(%arg0: i32, %arg1: memref<8x8xf32, #tpu.memory_space<vmem>>, %arg2: memref<8x128xbf16, #tpu.memory_space<vmem>>, %arg3: memref<1x128xf32, #tpu.memory_space<vmem>>, %arg4: memref<128x128xbf16, #tpu.memory_space<vmem>>, %arg5: memref<1x128xf32, #tpu.memory_space<vmem>>, %arg6: memref<128x2xbf16, #tpu.memory_space<vmem>>, %arg7: memref<1x2xf32, #tpu.memory_space<vmem>>, %arg8: memref<8x2xf32, #tpu.memory_space<vmem>>) attributes {dimension_semantics = [#tpu.dimension_semantics<parallel>], iteration_bounds = array<i64: 1>, scalar_prefetch = 0 : i64, scratch_operands = 0 : i64, tpu.core_type = #tpu.core_type<tc>, window_params = [{transform_indices = @transform_0, window_bounds = array<i64: 8, 8>}, {pipeline_mode = #tpu.pipeline_mode<synchronous>, transform_indices = @transform_1, window_bounds = array<i64: 8, 128>}, {pipeline_mode = #tpu.pipeline_mode<synchronous>, transform_indices = @transform_2, window_bounds = array<i64: 1, 128>}, {pipeline_mode = #tpu.pipeline_mode<synchronous>, transform_indices = @transform_3, window_bounds = array<i64: 128, 128>}, {pipeline_mode = #tpu.pipeline_mode<synchronous>, transform_indices = @transform_4, window_bounds = array<i64: 1, 128>}, {pipeline_mode = #tpu.pipeline_mode<synchronous>, transform_indices = @transform_5, window_bounds = array<i64: 128, 2>}, {pipeline_mode = #tpu.pipeline_mode<synchronous>, transform_indices = @transform_6, window_bounds = array<i64: 1, 2>}, {transform_indices = @transform_7, window_bounds = array<i64: 8, 2>}]} {
    %c0 = arith.constant 0 : index
    %c0_0 = arith.constant 0 : index
    %0 = vector.load %arg1[%c0, %c0_0] : memref<8x8xf32, #tpu.memory_space<vmem>>, vector<8x8xf32>
    %1 = arith.truncf %0 : vector<8x8xf32> to vector<8x8xbf16>
    %c0_1 = arith.constant 0 : index
    %c0_2 = arith.constant 0 : index
    %2 = vector.load %arg2[%c0_1, %c0_2] : memref<8x128xbf16, #tpu.memory_space<vmem>>, vector<8x128xbf16>
    %cst = arith.constant dense<0.000000e+00> : vector<8x128xf32>
    %3 = tpu.matmul %1, %2, %cst {dimension_numbers = #tpu.dot_dimension_numbers<[1], [0], [0], [1], [0, 0, 1, 1], [], []>} : vector<8x8xbf16>, vector<8x128xbf16>, vector<8x128xf32> -> vector<8x128xf32>
    %c0_3 = arith.constant 0 : index
    %c0_4 = arith.constant 0 : index
    %4 = vector.load %arg3[%c0_3, %c0_4] : memref<1x128xf32, #tpu.memory_space<vmem>>, vector<1x128xf32>
    %5 = vector.broadcast %4 : vector<1x128xf32> to vector<8x128xf32>
    %6 = arith.addf %3, %5 : vector<8x128xf32>
    %cst_5 = arith.constant 0.000000e+00 : f32
    %7 = vector.broadcast %cst_5 : f32 to vector<8x128xf32>
    %8 = arith.maximumf %6, %7 : vector<8x128xf32>
    %9 = arith.truncf %8 : vector<8x128xf32> to vector<8x128xbf16>
    %c0_6 = arith.constant 0 : index
    %c0_7 = arith.constant 0 : index
    %10 = vector.load %arg4[%c0_6, %c0_7] : memref<128x128xbf16, #tpu.memory_space<vmem>>, vector<128x128xbf16>
    %cst_8 = arith.constant dense<0.000000e+00> : vector<8x128xf32>
    %11 = tpu.matmul %9, %10, %cst_8 {dimension_numbers = #tpu.dot_dimension_numbers<[1], [0], [0], [1], [0, 0, 1, 1], [], []>} : vector<8x128xbf16>, vector<128x128xbf16>, vector<8x128xf32> -> vector<8x128xf32>
    %c0_9 = arith.constant 0 : index
    %c0_10 = arith.constant 0 : index
    %12 = vector.load %arg5[%c0_9, %c0_10] : memref<1x128xf32, #tpu.memory_space<vmem>>, vector<1x128xf32>
    %13 = vector.broadcast %12 : vector<1x128xf32> to vector<8x128xf32>
    %14 = arith.addf %11, %13 : vector<8x128xf32>
    %cst_11 = arith.constant 0.000000e+00 : f32
    %15 = vector.broadcast %cst_11 : f32 to vector<8x128xf32>
    %16 = arith.maximumf %14, %15 : vector<8x128xf32>
    %17 = arith.truncf %16 : vector<8x128xf32> to vector<8x128xbf16>
    %c0_12 = arith.constant 0 : index
    %c0_13 = arith.constant 0 : index
    %18 = vector.load %arg6[%c0_12, %c0_13] : memref<128x2xbf16, #tpu.memory_space<vmem>>, vector<128x2xbf16>
    %cst_14 = arith.constant dense<0.000000e+00> : vector<8x2xf32>
    %19 = tpu.matmul %17, %18, %cst_14 {dimension_numbers = #tpu.dot_dimension_numbers<[1], [0], [0], [1], [0, 0, 1, 1], [], []>} : vector<8x128xbf16>, vector<128x2xbf16>, vector<8x2xf32> -> vector<8x2xf32>
    %c0_15 = arith.constant 0 : index
    %c0_16 = arith.constant 0 : index
    %20 = vector.load %arg7[%c0_15, %c0_16] : memref<1x2xf32, #tpu.memory_space<vmem>>, vector<1x2xf32>
    %21 = vector.broadcast %20 : vector<1x2xf32> to vector<8x2xf32>
    %22 = arith.addf %19, %21 : vector<8x2xf32>
    %c0_17 = arith.constant 0 : index
    %c0_18 = arith.constant 0 : index
    %23 = vector.load %arg8[%c0_17, %c0_18] : memref<8x2xf32, #tpu.memory_space<vmem>>, vector<8x2xf32>
    tpu.vector_store %arg8[%c0_17, %c0_18], %22 {strides = array<i32>} : memref<8x2xf32, #tpu.memory_space<vmem>>, vector<8x2xf32>,
    return
  }
  func.func @transform_0(%arg0: i32) -> (i32, i32) {
    %c0_i32 = arith.constant 0 : i32
    %c0_i32_0 = arith.constant 0 : i32
    return %arg0, %c0_i32 : i32, i32
  }
  func.func @transform_1(%arg0: i32) -> (i32, i32) {
    %c0_i32 = arith.constant 0 : i32
    %c0_i32_0 = arith.constant 0 : i32
    %c0_i32_1 = arith.constant 0 : i32
    return %c0_i32, %c0_i32_0 : i32, i32
  }
  func.func @transform_2(%arg0: i32) -> (i32, i32) {
    %c0_i32 = arith.constant 0 : i32
    %c0_i32_0 = arith.constant 0 : i32
    %c0_i32_1 = arith.constant 0 : i32
    return %c0_i32, %c0_i32_0 : i32, i32
  }
  func.func @transform_3(%arg0: i32) -> (i32, i32) {
    %c0_i32 = arith.constant 0 : i32
    %c0_i32_0 = arith.constant 0 : i32
    %c0_i32_1 = arith.constant 0 : i32
    return %c0_i32, %c0_i32_0 : i32, i32
  }
  func.func @transform_4(%arg0: i32) -> (i32, i32) {
    %c0_i32 = arith.constant 0 : i32
    %c0_i32_0 = arith.constant 0 : i32
    %c0_i32_1 = arith.constant 0 : i32
    return %c0_i32, %c0_i32_0 : i32, i32
  }
  func.func @transform_5(%arg0: i32) -> (i32, i32) {
    %c0_i32 = arith.constant 0 : i32
    %c0_i32_0 = arith.constant 0 : i32
    %c0_i32_1 = arith.constant 0 : i32
    return %c0_i32, %c0_i32_0 : i32, i32
  }
  func.func @transform_6(%arg0: i32) -> (i32, i32) {
    %c0_i32 = arith.constant 0 : i32
    %c0_i32_0 = arith.constant 0 : i32
    %c0_i32_1 = arith.constant 0 : i32
    return %c0_i32, %c0_i32_0 : i32, i32
  }
  func.func @transform_7(%arg0: i32) -> (i32, i32) {
    %c0_i32 = arith.constant 0 : i32
    %c0_i32_0 = arith.constant 0 : i32
    return %arg0, %c0_i32 : i32, i32
  }
}

</mosaic_0001>

<llo_original>
// kernel: continuous_actor_forward.1
$region0: #{continuous_actor_forward.1}
  #allocation0 [shape = 'u32[]', space=smem, size = 0x4, offset = 0x4, fixed_abs, tag = 'smem constant byte address 0x4 - core index']
  #allocation1 [shape = 'u32[144,128]{1,0:T(1,128)}', space=vmem, size = 0x12000, scoped, tag = 'internal scratch']
  %s0 = inlined_call_operand.vmem [shape: f32[8,8], index: 0, kind: input, shape index: {}]
  %s1 = inlined_call_operand.vmem [shape: bf16[8,128], index: 1, kind: input, shape index: {}]
  %s2 = inlined_call_operand.vmem [shape: f32[1,128], index: 2, kind: input, shape index: {}]
  %s3 = inlined_call_operand.vmem [shape: bf16[128,128], index: 3, kind: input, shape index: {}]
  %s4 = inlined_call_operand.vmem [shape: f32[1,128], index: 4, kind: input, shape index: {}]
  %s5 = inlined_call_operand.vmem [shape: bf16[128,2], index: 5, kind: input, shape index: {}]
  %s6 = inlined_call_operand.vmem [shape: f32[1,2], index: 6, kind: input, shape index: {}]
  %s7 = inlined_call_operand.vmem [shape: f32[8,2], index: 7, kind: output, shape index: {}]
  %s8 = sld [smem:[#allocation0]]
  $region38: #{continuous_actor_forward.1} parent=0
    _
  %s10 = ssub.s32 1, %s8
  %s11 = scalar_select 0, %s10, %s8
  // Predicated region
  $region2: #{continuous_actor_forward.1} parent=0 // pred_check
    _
  $region3: #{continuous_actor_forward.1} parent=0 // pred_check_branch
    %13 = sbr.rel (0) target = $region5
  $region4: #{continuous_actor_forward.1} parent=0 // pred_region
    _
  $region5: #{continuous_actor_forward.1} parent=0 // pred_fallthru
    _
  // Predicated region
  $region6: #{continuous_actor_forward.1} parent=0 // pred_check
    _
  $region7: #{continuous_actor_forward.1} parent=0 // pred_check_branch
    %15 = sbr.rel (0) target = $region9
  $region8: #{continuous_actor_forward.1} parent=0 // pred_region
    _
  $region9: #{continuous_actor_forward.1} parent=0 // pred_fallthru
    _
  // Predicated region
  $region10: #{continuous_actor_forward.1} parent=0 // pred_check
    _
  $region11: #{continuous_actor_forward.1} parent=0 // pred_check_branch
    %17 = sbr.rel (0) target = $region13
  $region12: #{continuous_actor_forward.1} parent=0 // pred_region
    _
  $region13: #{continuous_actor_forward.1} parent=0 // pred_fallthru
    _
  // Predicated region
  $region14: #{continuous_actor_forward.1} parent=0 // pred_check
    _
  $region15: #{continuous_actor_forward.1} parent=0 // pred_check_branch
    %19 = sbr.rel (0) target = $region17
  $region16: #{continuous_actor_forward.1} parent=0 // pred_region
    _
  $region17: #{continuous_actor_forward.1} parent=0 // pred_fallthru
    _
  // Predicated region
  $region18: #{continuous_actor_forward.1} parent=0 // pred_check
    _
  $region19: #{continuous_actor_forward.1} parent=0 // pred_check_branch
    %21 = sbr.rel (0) target = $region21
  $region20: #{continuous_actor_forward.1} parent=0 // pred_region
    _
  $region21: #{continuous_actor_forward.1} parent=0 // pred_fallthru
    _
  // Predicated region
  $region22: #{continuous_actor_forward.1} parent=0 // pred_check
    _
  $region23: #{continuous_actor_forward.1} parent=0 // pred_check_branch
    %23 = sbr.rel (0) target = $region25
  $region24: #{continuous_actor_forward.1} parent=0 // pred_region
    _
  $region25: #{continuous_actor_forward.1} parent=0 // pred_fallthru
    _
  // Predicated region
  $region26: #{continuous_actor_forward.1} parent=0 // pred_check
    _
  $region27: #{continuous_actor_forward.1} parent=0 // pred_check_branch
    %25 = sbr.rel (0) target = $region29
  $region28: #{continuous_actor_forward.1} parent=0 // pred_region
    _
  $region29: #{continuous_actor_forward.1} parent=0 // pred_fallthru
    _
  %v27 = vld [vmem:[%s0] sm:$0xff]
  %v28 = vpack.c.bf16 %v27, %v27
  %v29 = vld [vmem:[%s1] sm:$0xf]
  %v30 = vld [vmem:[%s2] sm:$0x1]
  %v32 = vlaneseq
  %v33 = vshrl.u32 %v32, 7
  %v34 = vsub.s32 0, %v33
  %v35 = vrot.slane %v30, %v34
  %vm37 = vcmask 64512
  %v39 = vsel %vm37, %v28, 0
  %vm41 = vcmask 1043456
  %v43 = vsel %vm41, %v29, 0
  %45 = vmatprep.subr.bf16.mxu0 0
  %46 = vmatpush1.bf16.msra.mxu0 %v43
  %47 = vmatprep.subr.bf16.mxu0 0
  %48 = vmatpush1.bf16.msra.mxu0 0
  %49 = vmatprep.subr.bf16.mxu0 0
  %50 = vmatpush1.bf16.msra.mxu0 0
  %51 = vmatprep.subr.bf16.mxu0 0
  %52 = vmatpush1.bf16.msra.mxu0 0
  %53 = vmatprep.subr.bf16.mxu0 0
  %54 = vmatpush1.bf16.msra.mxu0 0
  %55 = vmatprep.subr.bf16.mxu0 0
  %56 = vmatpush1.bf16.msra.mxu0 0
  %57 = vmatprep.subr.bf16.mxu0 0
  %58 = vmatpush1.bf16.msra.mxu0 0
  %59 = vmatprep.subr.bf16.mxu0 0
  %60 = vmatpush1.bf16.msra.mxu0 0
  %61 = vmatprep.subr.bf16.mxu0 0
  %62 = vmatpush1.bf16.msra.mxu0 0
  %63 = vmatprep.subr.bf16.mxu0 0
  %64 = vmatpush1.bf16.msra.mxu0 0
  %65 = vmatprep.subr.bf16.mxu0 0
  %66 = vmatpush1.bf16.msra.mxu0 0
  %67 = vmatprep.subr.bf16.mxu0 0
  %68 = vmatpush1.bf16.msra.mxu0 0
  %69 = vmatprep.subr.bf16.mxu0 0
  %70 = vmatpush1.bf16.msra.mxu0 0
  %71 = vmatprep.subr.bf16.mxu0 0
  %72 = vmatpush1.bf16.msra.mxu0 0
  %73 = vmatprep.subr.bf16.mxu0 0
  %74 = vmatpush1.bf16.msra.mxu0 0
  %75 = vmatprep.subr.bf16.mxu0 0
  %76 = vmatpush1.bf16.msra.mxu0 0
  %77 = vmatprep.mubr.bf16.mxu0 0
  %78 = vmatmul.mubr.bf16.gmra.mrb[0].mxu0 %v39
  %v79 = vpop.f32.mrb[0].mxu0
  %v80 = vadd.f32 %v35, %v79
  %v81 = vpop.f32.mrb[0].mxu0
  %v82 = vpop.f32.mrb[0].mxu0
  %v83 = vpop.f32.mrb[0].mxu0
  %84 = vdwg.mxu0
  %v85 = vmax.f32 %v80, 0.0
  %v86 = vpack.c.bf16 %v85, %v85
  %v87 = vld [vmem:[%s3] sm:$0xf]
  %v88 = vld [vmem:[%s3 + $0x4] sm:$0xf]
  %v89 = vld [vmem:[%s3 + $0x8] sm:$0xf]
  %v90 = vld [vmem:[%s3 + $0xc] sm:$0xf]
  %v91 = vld [vmem:[%s3 + $0x10] sm:$0xf]
  %v92 = vld [vmem:[%s3 + $0x14] sm:$0xf]
  %v93 = vld [vmem:[%s3 + $0x18] sm:$0xf]
  %v94 = vld [vmem:[%s3 + $0x1c] sm:$0xf]
  %v95 = vld [vmem:[%s3 + $0x20] sm:$0xf]
  %v96 = vld [vmem:[%s3 + $0x24] sm:$0xf]
  %v97 = vld [vmem:[%s3 + $0x28] sm:$0xf]
  %v98 = vld [vmem:[%s3 + $0x2c] sm:$0xf]
  %v99 = vld [vmem:[%s3 + $0x30] sm:$0xf]
  %v100 = vld [vmem:[%s3 + $0x34] sm:$0xf]
  %v101 = vld [vmem:[%s3 + $0x38] sm:$0xf]
  %v102 = vld [vmem:[%s3 + $0x3c] sm:$0xf]
  %v103 = vld [vmem:[%s4] sm:$0x1]
  %v105 = vlaneseq
  %v106 = vshrl.u32 %v105, 7
  %v107 = vsub.s32 0, %v106
  %v108 = vrot.slane %v103, %v107
  %v126 = vunpack.c.l.b16 %v87
  %v127 = vunpack.c.l.b16 %v88
  %v128 = vunpack.c.l.b16 %v89
  %v129 = vunpack.c.l.b16 %v90
  %v130 = vunpack.c.l.b16 %v91
  %v131 = vunpack.c.l.b16 %v92
  %v132 = vunpack.c.l.b16 %v93
  %v133 = vunpack.c.l.b16 %v94
  %v134 = vunpack.c.l.b16 %v95
  %v135 = vunpack.c.l.b16 %v96
  %v136 = vunpack.c.l.b16 %v97
  %v137 = vunpack.c.l.b16 %v98
  %v138 = vunpack.c.l.b16 %v99
  %v139 = vunpack.c.l.b16 %v100
  %v140 = vunpack.c.l.b16 %v101
  %v141 = vunpack.c.l.b16 %v102
  %v142 = vpack.c.b16 %v127, %v126
  %v143 = vpack.c.b16 %v129, %v128
  %v144 = vpack.c.b16 %v131, %v130
  %v145 = vpack.c.b16 %v133, %v132
  %v146 = vpack.c.b16 %v135, %v134
  %v147 = vpack.c.b16 %v137, %v136
  %v148 = vpack.c.b16 %v139, %v138
  %v149 = vpack.c.b16 %v141, %v140
  %158 = vmatprep.subr.bf16.mxu0 0
  %159 = vmatpush1.bf16.msra.mxu0 %v142
  %160 = vmatprep.subr.bf16.mxu0 0
  %161 = vmatpush1.bf16.msra.mxu0 %v143
  %162 = vmatprep.subr.bf16.mxu0 0
  %163 = vmatpush1.bf16.msra.mxu0 %v144
  %164 = vmatprep.subr.bf16.mxu0 0
  %165 = vmatpush1.bf16.msra.mxu0 %v145
  %166 = vmatprep.subr.bf16.mxu0 0
  %167 = vmatpush1.bf16.msra.mxu0 %v146
  %168 = vmatprep.subr.bf16.mxu0 0
  %169 = vmatpush1.bf16.msra.mxu0 %v147
  %170 = vmatprep.subr.bf16.mxu0 0
  %171 = vmatpush1.bf16.msra.mxu0 %v148
  %172 = vmatprep.subr.bf16.mxu0 0
  %173 = vmatpush1.bf16.msra.mxu0 %v149
  %174 = vmatprep.subr.bf16.mxu0 0
  %175 = vmatpush1.bf16.msra.mxu0 0
  %176 = vmatprep.subr.bf16.mxu0 0
  %177 = vmatpush1.bf16.msra.mxu0 0
  %178 = vmatprep.subr.bf16.mxu0 0
  %179 = vmatpush1.bf16.msra.mxu0 0
  %180 = vmatprep.subr.bf16.mxu0 0
  %181 = vmatpush1.bf16.msra.mxu0 0
  %182 = vmatprep.subr.bf16.mxu0 0
  %183 = vmatpush1.bf16.msra.mxu0 0
  %184 = vmatprep.subr.bf16.mxu0 0
  %185 = vmatpush1.bf16.msra.mxu0 0
  %186 = vmatprep.subr.bf16.mxu0 0
  %187 = vmatpush1.bf16.msra.mxu0 0
  %188 = vmatprep.subr.bf16.mxu0 0
  %189 = vmatpush1.bf16.msra.mxu0 0
  %190 = vmatprep.mubr.bf16.mxu0 0
  %191 = vmatmul.mubr.bf16.gmra.mrb[0].mxu0 %v86
  %v192 = vpop.f32.mrb[0].mxu0
  %v193 = vadd.f32 %v108, %v192
  %v194 = vpop.f32.mrb[0].mxu0
  %v195 = vpop.f32.mrb[0].mxu0
  %v196 = vpop.f32.mrb[0].mxu0
  %197 = vdwg.mxu0
  %v198 = vmax.f32 %v193, 0.0
  %v199 = vpack.c.bf16 %v198, %v198
  %v200 = vld [vmem:[%s5] sm:$0xf]
  %v201 = vld [vmem:[%s5 + $0x4] sm:$0xf]
  %v202 = vld [vmem:[%s5 + $0x8] sm:$0xf]
  %v203 = vld [vmem:[%s5 + $0xc] sm:$0xf]
  %v204 = vld [vmem:[%s5 + $0x10] sm:$0xf]
  %v205 = vld [vmem:[%s5 + $0x14] sm:$0xf]
  %v206 = vld [vmem:[%s5 + $0x18] sm:$0xf]
  %v207 = vld [vmem:[%s5 + $0x1c] sm:$0xf]
  %v208 = vld [vmem:[%s5 + $0x20] sm:$0xf]
  %v209 = vld [vmem:[%s5 + $0x24] sm:$0xf]
  %v210 = vld [vmem:[%s5 + $0x28] sm:$0xf]
  %v211 = vld [vmem:[%s5 + $0x2c] sm:$0xf]
  %v212 = vld [vmem:[%s5 + $0x30] sm:$0xf]
  %v213 = vld [vmem:[%s5 + $0x34] sm:$0xf]
  %v214 = vld [vmem:[%s5 + $0x38] sm:$0xf]
  %v215 = vld [vmem:[%s5 + $0x3c] sm:$0xf]
  %v216 = vld [vmem:[%s6] sm:$0x1]
  %v218 = vlaneseq
  %v219 = vshrl.u32 %v218, 7
  %v220 = vsub.s32 0, %v219
  %v221 = vrot.slane %v216, %v220
  %v239 = vunpack.c.l.b16 %v200
  %v240 = vunpack.c.l.b16 %v201
  %v241 = vunpack.c.l.b16 %v202
  %v242 = vunpack.c.l.b16 %v203
  %v243 = vunpack.c.l.b16 %v204
  %v244 = vunpack.c.l.b16 %v205
  %v245 = vunpack.c.l.b16 %v206
  %v246 = vunpack.c.l.b16 %v207
  %v247 = vunpack.c.l.b16 %v208
  %v248 = vunpack.c.l.b16 %v209
  %v249 = vunpack.c.l.b16 %v210
  %v250 = vunpack.c.l.b16 %v211
  %v251 = vunpack.c.l.b16 %v212
  %v252 = vunpack.c.l.b16 %v213
  %v253 = vunpack.c.l.b16 %v214
  %v254 = vunpack.c.l.b16 %v215
  %v255 = vpack.c.b16 %v240, %v239
  %v256 = vpack.c.b16 %v242, %v241
  %v257 = vpack.c.b16 %v244, %v243
  %v258 = vpack.c.b16 %v246, %v245
  %v259 = vpack.c.b16 %v248, %v247
  %v260 = vpack.c.b16 %v250, %v249
  %v261 = vpack.c.b16 %v252, %v251
  %v262 = vpack.c.b16 %v254, %v253
  %271 = vmatprep.subr.bf16.mxu0 0
  %272 = vmatpush1.bf16.msra.mxu0 %v255
  %273 = vmatprep.subr.bf16.mxu0 0
  %274 = vmatpush1.bf16.msra.mxu0 %v256
  %275 = vmatprep.subr.bf16.mxu0 0
  %276 = vmatpush1.bf16.msra.mxu0 %v257
  %277 = vmatprep.subr.bf16.mxu0 0
  %278 = vmatpush1.bf16.msra.mxu0 %v258
  %279 = vmatprep.subr.bf16.mxu0 0
  %280 = vmatpush1.bf16.msra.mxu0 %v259
  %281 = vmatprep.subr.bf16.mxu0 0
  %282 = vmatpush1.bf16.msra.mxu0 %v260
  %283 = vmatprep.subr.bf16.mxu0 0
  %284 = vmatpush1.bf16.msra.mxu0 %v261
  %285 = vmatprep.subr.bf16.mxu0 0
  %286 = vmatpush1.bf16.msra.mxu0 %v262
  %287 = vmatprep.subr.bf16.mxu0 0
  %288 = vmatpush1.bf16.msra.mxu0 0
  %289 = vmatprep.subr.bf16.mxu0 0
  %290 = vmatpush1.bf16.msra.mxu0 0
  %291 = vmatprep.subr.bf16.mxu0 0
  %292 = vmatpush1.bf16.msra.mxu0 0
  %293 = vmatprep.subr.bf16.mxu0 0
  %294 = vmatpush1.bf16.msra.mxu0 0
  %295 = vmatprep.subr.bf16.mxu0 0
  %296 = vmatpush1.bf16.msra.mxu0 0
  %297 = vmatprep.subr.bf16.mxu0 0
  %298 = vmatpush1.bf16.msra.mxu0 0
  %299 = vmatprep.subr.bf16.mxu0 0
  %300 = vmatpush1.bf16.msra.mxu0 0
  %301 = vmatprep.subr.bf16.mxu0 0
  %302 = vmatpush1.bf16.msra.mxu0 0
  %303 = vmatprep.mubr.bf16.mxu0 0
  %304 = vmatmul.mubr.bf16.gmra.mrb[0].mxu0 %v199
  %v305 = vpop.f32.mrb[0].mxu0
  %v306 = vadd.f32 %v221, %v305
  %v307 = vpop.f32.mrb[0].mxu0
  %v308 = vpop.f32.mrb[0].mxu0
  %v309 = vpop.f32.mrb[0].mxu0
  %310 = vdwg.mxu0
  %vm311 = vcmask 15360
  %312 = vst.msk [vmem:[%s7] sm:$0xff] %vm311, %v306
  // Predicated region
  $region30: #{continuous_actor_forward.1} parent=0 // pred_check
    _
  $region31: #{continuous_actor_forward.1} parent=0 // pred_check_branch
    %314 = sbr.rel (0) target = $region33
  $region32: #{continuous_actor_forward.1} parent=0 // pred_region
    _
  $region33: #{continuous_actor_forward.1} parent=0 // pred_fallthru
    _
  // Predicated region
  $region34: #{continuous_actor_forward.1} parent=0 // pred_check
    _
  $region35: #{continuous_actor_forward.1} parent=0 // pred_check_branch
    %316 = sbr.rel (0) target = $region37
  $region36: #{continuous_actor_forward.1} parent=0 // pred_region
    _
  $region37: #{continuous_actor_forward.1} parent=0 // pred_fallthru
    _

</llo_original>
